<compile_context>
chip_gen: v7x
topology: tpu7x:2x2x1
jax: 0.10.0
libtpu: 0.0.40
codegen_flags: <defaults>
</compile_context>

<pallas_src>
import numpy as np
import jax
import jax.numpy as jnp
from jax.experimental import pallas as pl
from jax.experimental.pallas import tpu as pltpu


# ---------------- Pallas kernel ----------------------------------------------

def _rot8(v, k):
    """Sublane rotation of an (8, T) block: result[i] = v[(i + k) % 8]."""
    return jnp.concatenate([v[k:], v[:k]], axis=0)


def boxes_encode_kernel(x_ref, w1_ref, b1_ref, w2_ref, b2_ref, out_ref):
    # x_ref: (16, T)  rows 0-7  = [sx1, sy1, ox1, oy1, ux1, uy1, 0, 0]
    #                 rows 8-15 = [sx2, sy2, ox2, oy2, ux2, uy2, 0, 0]
    x1 = x_ref[0:8, :]
    x2 = x_ref[8:16, :]

    wh = x2 - x1 + 1.0           # [s.w, s.h, o.w, o.h, u.w, u.h, 1, 1]
    c = x1 + 0.5 * wh            # box centers, same row layout
    iwh = 1.0 / wh               # shared reciprocals (EUP)
    lwh = jnp.log(wh)            # shared logs (EUP)

    area = wh * _rot8(wh, 1)          # rows 0, 2: s.w*s.h, o.w*o.h
    lda = _rot8(lwh, 2) - lwh         # rows 0-3 : dw_so, dh_so, -dw_uo, -dh_uo
    ldb = _rot8(lwh, 4) - lwh         # rows 0, 1: dw_su, dh_su
    d1 = (_rot8(c, 2) - c) * iwh      # rows 0-3 : dx_so, dy_so, dx_ou, dy_ou
    d2 = (_rot8(c, 4) - c) * iwh      # rows 0,1,4,5: dx_su, dy_su, dx_us, dy_us
    d3 = (_rot8(c, 6) - c) * iwh      # rows 2-5 : dx_os, dy_os, dx_uo, dy_uo

    # 8 aligned (8, T) blocks -> (64, T); unused rows carry finite junk and are
    # zeroed out by the folded W1 on the host.
    prim = jnp.concatenate([x1, x2, area, lda, ldb, d1, d2, d3], axis=0)

    # h = LeakyReLU(W1_eff prim + b1); y = LeakyReLU(W2 h + b2)   (slope 0.1)
    h = jnp.dot(w1_ref[...], prim, preferred_element_type=jnp.float32)
    h = h + b1_ref[...]
    h = jnp.maximum(h, 0.1 * h)
    y = jnp.dot(w2_ref[...], h, preferred_element_type=jnp.float32)
    y = y + b2_ref[...]
    out_ref[...] = jnp.maximum(y, 0.1 * y)


# ---------------- host-side W1 folding ----------------------------------------
# Original feature f -> primitive row (one nonzero per feature).
_PRIM_ROWS = np.array([40, 41, 24, 25, 58, 59,      # pair(s, o)
                       48, 49, 32, 33, 52, 53,      # pair(s, u)
                       60, 61, 26, 27, 42, 43,      # pair(u, o)
                       0, 1, 8, 9, 16,              # box_feat(s)
                       2, 3, 10, 11, 18],           # box_feat(o)
                      dtype=np.int32)
_SIGNS = np.ones(28, np.float32)
_SIGNS[[14, 15]] = -1.0                              # dw_uo, dh_uo = -lda[2:4]


def _fold_w1(w1, width, height):
    """Fold feature permutation, signs and 1/width, 1/height, 1/(w*h) scaling
    into the first Linear layer: returns (64 prim, 64 out) effective weight."""
    inv_w = 1.0 / width
    inv_h = 1.0 / height
    inv_wh = inv_w * inv_h
    scales = jnp.asarray(_SIGNS)
    scales = scales.at[jnp.asarray([18, 20, 23, 25])].mul(inv_w)
    scales = scales.at[jnp.asarray([19, 21, 24, 26])].mul(inv_h)
    scales = scales.at[jnp.asarray([22, 27])].mul(inv_wh)
    w1f = w1.astype(jnp.float32)
    w1_eff = jnp.zeros((64, w1f.shape[1]), jnp.float32)
    return w1_eff.at[jnp.asarray(_PRIM_ROWS)].set(scales[:, None] * w1f)


# ---------------- wrapper ------------------------------------------------------

def boxes_encode(boxes, rel_inds, width, height, params, *, tile=8192):
    """boxes: (M, 4) [x1,y1,x2,y2]; rel_inds: (N, 2) int32; params as in the
    PyTorch module but with Linear weights stored as (in, out), biases (1, out).
    Returns (N, 64) float32."""
    w1, b1, w2, b2 = params
    n = rel_inds.shape[0]

    # Gather subject / object boxes + union boxes (plain-JAX glue).
    boxes = boxes.astype(jnp.float32)
    s = jnp.take(boxes, rel_inds[:, 0], axis=0)
    o = jnp.take(boxes, rel_inds[:, 1], axis=0)
    u = jnp.concatenate([jnp.minimum(s[:, 0:2], o[:, 0:2]),
                         jnp.maximum(s[:, 2:4], o[:, 2:4])], axis=1)

    # (N, 16): [sx1,sy1,ox1,oy1,ux1,uy1,0,0, sx2,sy2,ox2,oy2,ux2,uy2,0,0]
    zeros2 = jnp.zeros((n, 2), jnp.float32)
    x_cols = jnp.concatenate(
        [s[:, 0:2], o[:, 0:2], u[:, 0:2], zeros2,
         s[:, 2:4], o[:, 2:4], u[:, 2:4], zeros2], axis=1)

    # Lane-dense layout: N along lanes, padded to a multiple of the tile.
    tile = max(128, (int(tile) // 128) * 128)
    t = min(tile, max(128, ((n + 127) // 128) * 128))
    n_pad = ((n + t - 1) // t) * t
    x_t = jnp.pad(x_cols, ((0, n_pad - n), (0, 0))).T         # (16, n_pad)

    w1k = _fold_w1(w1, width, height).T                        # (64 out, 64 K)
    w2k = w2.T.astype(jnp.float32)                             # (64 out, 64 in)
    b1k = b1.reshape(-1, 1).astype(jnp.float32)                # (64, 1)
    b2k = b2.reshape(-1, 1).astype(jnp.float32)                # (64, 1)

    grid = (n_pad // t,)
    cost = pl.CostEstimate(
        flops=2 * (64 * 64 + 64 * 64) * n_pad,
        transcendentals=16 * n_pad,
        bytes_accessed=(16 * 4 + 64 * 4) * n_pad + 2 * 64 * 64 * 4,
    )

    out_t = pl.pallas_call(
        boxes_encode_kernel,
        out_shape=jax.ShapeDtypeStruct((64, n_pad), jnp.float32),
        grid_spec=pltpu.PrefetchScalarGridSpec(
            num_scalar_prefetch=0,
            grid=grid,
            in_specs=[
                pl.BlockSpec((16, t), lambda i: (0, i)),       # coord tile
                pl.BlockSpec((64, 64), lambda i: (0, 0)),      # W1_eff^T (resident)
                pl.BlockSpec((64, 1), lambda i: (0, 0)),       # b1
                pl.BlockSpec((64, 64), lambda i: (0, 0)),      # W2^T (resident)
                pl.BlockSpec((64, 1), lambda i: (0, 0)),       # b2
            ],
            out_specs=pl.BlockSpec((64, t), lambda i: (0, i)),
        ),
        compiler_params=pltpu.CompilerParams(
            dimension_semantics=("parallel",),
            vmem_limit_bytes=48 * 1024 * 1024),
        cost_estimate=cost,
    )(x_t, w1k, b1k, w2k, b2k)

    # TODO(synk): downstream consumers accepting (64, N) can use out_t[:, :n]
    # directly and skip this extra HBM transpose pass.
    return out_t[:, :n].T                                      # (N, 64)


# ---------------- pure-JAX reference (for self-check) -------------------------

def _ref_forward(boxes, rel_inds, width, height, params):
    w1, b1, w2, b2 = params
    s = boxes[rel_inds[:, 0]]
    o = boxes[rel_inds[:, 1]]
    u = jnp.concatenate(
        [jnp.minimum(s[:, 0:2], o[:, 0:2]), jnp.maximum(s[:, 2:4], o[:, 2:4])],
        axis=1)

    def box_feat(b):
        f1 = b[:, 0] / width
        f2 = b[:, 1] / height
        f3 = b[:, 2] / width
        f4 = b[:, 3] / height
        f5 = (b[:, 2] - b[:, 0] + 1) * (b[:, 3] - b[:, 1] + 1) / (width * height)
        return jnp.stack((f1, f2, f3, f4, f5), -1)

    def tinv(a, b):
        ew = a[:, 2] - a[:, 0] + 1.0
        eh = a[:, 3] - a[:, 1] + 1.0
        ecx = a[:, 0] + 0.5 * ew
        ecy = a[:, 1] + 0.5 * eh
        gw = b[:, 2] - b[:, 0] + 1.0
        gh = b[:, 3] - b[:, 1] + 1.0
        gcx = b[:, 0] + 0.5 * gw
        gcy = b[:, 1] + 0.5 * gh
        return jnp.stack(((gcx - ecx) / ew, (gcy - ecy) / eh,
                          jnp.log(gw / ew), jnp.log(gh / eh)), -1)

    def pair(a, b):
        return jnp.concatenate((tinv(a, b), tinv(b, a)[:, :2]), -1)

    feat = jnp.concatenate(
        (pair(s, o), pair(s, u), pair(u, o), box_feat(s), box_feat(o)), -1)
    h = jax.nn.leaky_relu(feat @ w1 + b1[0], 0.1)
    return jax.nn.leaky_relu(h @ w2 + b2[0], 0.1)


# ---------------- main ---------------------------------------------------------

if __name__ == "__main__":
    key = jax.random.PRNGKey(0)
    k_box, k_wh, k_rel, k_rel2, k1, k2, k3, k4 = jax.random.split(key, 8)

    M = 6          # number of boxes
    N = 8          # number of relation pairs (small demo)
    width, height = 128.0, 96.0

    xy1 = jax.random.uniform(k_box, (M, 2), jnp.float32, 0.0, 60.0)
    wh_box = jax.random.uniform(k_wh, (M, 2), jnp.float32, 2.0, 60.0)
    boxes = jnp.concatenate([xy1, xy1 + wh_box], axis=1)   # (M, 4) [x1,y1,x2,y2]

    rel_inds = jax.random.randint(k_rel, (N, 2), 0, M, dtype=jnp.int32)

    # Deterministic MLP params (Linear(28,64), Linear(64,64)); weights (in,out).
    lim1 = 1.0 / jnp.sqrt(28.0)
    lim2 = 1.0 / jnp.sqrt(64.0)
    w1 = jax.random.uniform(k1, (28, 64), jnp.float32, -lim1, lim1)
    b1 = jax.random.uniform(k2, (1, 64), jnp.float32, -lim1, lim1)
    w2 = jax.random.uniform(k3, (64, 64), jnp.float32, -lim2, lim2)
    b2 = jax.random.uniform(k4, (1, 64), jnp.float32, -lim2, lim2)
    params = (w1, b1, w2, b2)

    # Test 1: tiny N (single tile, padded to 128 lanes).
    out = boxes_encode(boxes, rel_inds, width, height, params)
    out = jax.block_until_ready(out)
    ref = _ref_forward(boxes, rel_inds, width, height, params)
    assert out.shape == (N, 64)
    assert jnp.allclose(out, ref, atol=5e-4, rtol=5e-4), float(
        jnp.max(jnp.abs(out - ref)))

    # Test 2: multi-tile grid (exercises pipelining, padding, resident weights).
    N2 = 300
    rel_inds2 = jax.random.randint(k_rel2, (N2, 2), 0, M, dtype=jnp.int32)
    out2 = boxes_encode(boxes, rel_inds2, width, height, params, tile=128)
    out2 = jax.block_until_ready(out2)
    ref2 = _ref_forward(boxes, rel_inds2, width, height, params)
    assert out2.shape == (N2, 64)
    assert jnp.allclose(out2, ref2, atol=5e-4, rtol=5e-4), float(
        jnp.max(jnp.abs(out2 - ref2)))

    print("KERNEL_OK")
</pallas_src>

<mosaic_0001>
module attributes {stable_mosaic.version = 11 : i64} {
  func.func @boxes_encode_kernel(%arg0: i32, %arg1: memref<16x128xf32, #tpu.memory_space<vmem>>, %arg2: memref<64x64xf32, #tpu.memory_space<vmem>>, %arg3: memref<64x1xf32, #tpu.memory_space<vmem>>, %arg4: memref<64x64xf32, #tpu.memory_space<vmem>>, %arg5: memref<64x1xf32, #tpu.memory_space<vmem>>, %arg6: memref<64x128xf32, #tpu.memory_space<vmem>>) attributes {dimension_semantics = [#tpu.dimension_semantics<parallel>], iteration_bounds = array<i64: 1>, scalar_prefetch = 0 : i64, scratch_operands = 0 : i64, tpu.core_type = #tpu.core_type<tc>, window_params = [{transform_indices = @transform_0, window_bounds = array<i64: 16, 128>}, {pipeline_mode = #tpu.pipeline_mode<synchronous>, transform_indices = @transform_1, window_bounds = array<i64: 64, 64>}, {pipeline_mode = #tpu.pipeline_mode<synchronous>, transform_indices = @transform_2, window_bounds = array<i64: 64, 1>}, {pipeline_mode = #tpu.pipeline_mode<synchronous>, transform_indices = @transform_3, window_bounds = array<i64: 64, 64>}, {pipeline_mode = #tpu.pipeline_mode<synchronous>, transform_indices = @transform_4, window_bounds = array<i64: 64, 1>}, {transform_indices = @transform_5, window_bounds = array<i64: 64, 128>}]} {
    %c0 = arith.constant 0 : index
    %c0_0 = arith.constant 0 : index
    %0 = vector.load %arg1[%c0, %c0_0] : memref<16x128xf32, #tpu.memory_space<vmem>>, vector<8x128xf32>
    %c8 = arith.constant 8 : index
    %c0_1 = arith.constant 0 : index
    %1 = vector.load %arg1[%c8, %c0_1] : memref<16x128xf32, #tpu.memory_space<vmem>>, vector<8x128xf32>
    %2 = arith.subf %1, %0 : vector<8x128xf32>
    %cst = arith.constant 1.000000e+00 : f32
    %3 = vector.broadcast %cst : f32 to vector<8x128xf32>
    %4 = arith.addf %2, %3 : vector<8x128xf32>
    %cst_2 = arith.constant 5.000000e-01 : f32
    %5 = vector.broadcast %cst_2 : f32 to vector<8x128xf32>
    %6 = arith.mulf %5, %4 : vector<8x128xf32>
    %7 = arith.addf %0, %6 : vector<8x128xf32>
    %cst_3 = arith.constant 1.000000e+00 : f32
    %8 = vector.broadcast %cst_3 : f32 to vector<8x128xf32>
    %9 = arith.divf %8, %4 : vector<8x128xf32>
    %10 = math.log %4 : vector<8x128xf32>
    %11 = vector.extract_strided_slice %4 {offsets = [1, 0], sizes = [7, 128], strides = [1, 1]} : vector<8x128xf32> to vector<7x128xf32>
    %12 = vector.extract_strided_slice %4 {offsets = [0, 0], sizes = [1, 128], strides = [1, 1]} : vector<8x128xf32> to vector<1x128xf32>
    %13 = tpu.concatenate %11, %12 in 0 : vector<7x128xf32>, vector<1x128xf32> -> vector<8x128xf32>
    %14 = arith.mulf %4, %13 : vector<8x128xf32>
    %15 = vector.extract_strided_slice %10 {offsets = [2, 0], sizes = [6, 128], strides = [1, 1]} : vector<8x128xf32> to vector<6x128xf32>
    %16 = vector.extract_strided_slice %10 {offsets = [0, 0], sizes = [2, 128], strides = [1, 1]} : vector<8x128xf32> to vector<2x128xf32>
    %17 = tpu.concatenate %15, %16 in 0 : vector<6x128xf32>, vector<2x128xf32> -> vector<8x128xf32>
    %18 = arith.subf %17, %10 : vector<8x128xf32>
    %19 = vector.extract_strided_slice %10 {offsets = [4, 0], sizes = [4, 128], strides = [1, 1]} : vector<8x128xf32> to vector<4x128xf32>
    %20 = vector.extract_strided_slice %10 {offsets = [0, 0], sizes = [4, 128], strides = [1, 1]} : vector<8x128xf32> to vector<4x128xf32>
    %21 = tpu.concatenate %19, %20 in 0 : vector<4x128xf32>, vector<4x128xf32> -> vector<8x128xf32>
    %22 = arith.subf %21, %10 : vector<8x128xf32>
    %23 = vector.extract_strided_slice %7 {offsets = [2, 0], sizes = [6, 128], strides = [1, 1]} : vector<8x128xf32> to vector<6x128xf32>
    %24 = vector.extract_strided_slice %7 {offsets = [0, 0], sizes = [2, 128], strides = [1, 1]} : vector<8x128xf32> to vector<2x128xf32>
    %25 = tpu.concatenate %23, %24 in 0 : vector<6x128xf32>, vector<2x128xf32> -> vector<8x128xf32>
    %26 = arith.subf %25, %7 : vector<8x128xf32>
    %27 = arith.mulf %26, %9 : vector<8x128xf32>
    %28 = vector.extract_strided_slice %7 {offsets = [4, 0], sizes = [4, 128], strides = [1, 1]} : vector<8x128xf32> to vector<4x128xf32>
    %29 = vector.extract_strided_slice %7 {offsets = [0, 0], sizes = [4, 128], strides = [1, 1]} : vector<8x128xf32> to vector<4x128xf32>
    %30 = tpu.concatenate %28, %29 in 0 : vector<4x128xf32>, vector<4x128xf32> -> vector<8x128xf32>
    %31 = arith.subf %30, %7 : vector<8x128xf32>
    %32 = arith.mulf %31, %9 : vector<8x128xf32>
    %33 = vector.extract_strided_slice %7 {offsets = [6, 0], sizes = [2, 128], strides = [1, 1]} : vector<8x128xf32> to vector<2x128xf32>
    %34 = vector.extract_strided_slice %7 {offsets = [0, 0], sizes = [6, 128], strides = [1, 1]} : vector<8x128xf32> to vector<6x128xf32>
    %35 = tpu.concatenate %33, %34 in 0 : vector<2x128xf32>, vector<6x128xf32> -> vector<8x128xf32>
    %36 = arith.subf %35, %7 : vector<8x128xf32>
    %37 = arith.mulf %36, %9 : vector<8x128xf32>
    %38 = tpu.concatenate %0, %1, %14, %18, %22, %27, %32, %37 in 0 : vector<8x128xf32>, vector<8x128xf32>, vector<8x128xf32>, vector<8x128xf32>, vector<8x128xf32>, vector<8x128xf32>, vector<8x128xf32>, vector<8x128xf32> -> vector<64x128xf32>
    %c0_4 = arith.constant 0 : index
    %c0_5 = arith.constant 0 : index
    %39 = vector.load %arg2[%c0_4, %c0_5] : memref<64x64xf32, #tpu.memory_space<vmem>>, vector<64x64xf32>
    %cst_6 = arith.constant dense<0.000000e+00> : vector<64x128xf32>
    %40 = tpu.matmul %39, %38, %cst_6 {dimension_numbers = #tpu.dot_dimension_numbers<[1], [0], [0], [1], [0, 0, 1, 1], [], []>} : vector<64x64xf32>, vector<64x128xf32>, vector<64x128xf32> -> vector<64x128xf32>
    %c0_7 = arith.constant 0 : index
    %c0_8 = arith.constant 0 : index
    %41 = vector.load %arg3[%c0_7, %c0_8] : memref<64x1xf32, #tpu.memory_space<vmem>>, vector<64x1xf32>
    %42 = vector.broadcast %41 : vector<64x1xf32> to vector<64x128xf32>
    %43 = arith.addf %40, %42 : vector<64x128xf32>
    %cst_9 = arith.constant 1.000000e-01 : f32
    %44 = vector.broadcast %cst_9 : f32 to vector<64x128xf32>
    %45 = arith.mulf %44, %43 : vector<64x128xf32>
    %46 = arith.maximumf %43, %45 : vector<64x128xf32>
    %c0_10 = arith.constant 0 : index
    %c0_11 = arith.constant 0 : index
    %47 = vector.load %arg4[%c0_10, %c0_11] : memref<64x64xf32, #tpu.memory_space<vmem>>, vector<64x64xf32>
    %cst_12 = arith.constant dense<0.000000e+00> : vector<64x128xf32>
    %48 = tpu.matmul %47, %46, %cst_12 {dimension_numbers = #tpu.dot_dimension_numbers<[1], [0], [0], [1], [0, 0, 1, 1], [], []>} : vector<64x64xf32>, vector<64x128xf32>, vector<64x128xf32> -> vector<64x128xf32>
    %c0_13 = arith.constant 0 : index
    %c0_14 = arith.constant 0 : index
    %49 = vector.load %arg5[%c0_13, %c0_14] : memref<64x1xf32, #tpu.memory_space<vmem>>, vector<64x1xf32>
    %50 = vector.broadcast %49 : vector<64x1xf32> to vector<64x128xf32>
    %51 = arith.addf %48, %50 : vector<64x128xf32>
    %cst_15 = arith.constant 1.000000e-01 : f32
    %52 = vector.broadcast %cst_15 : f32 to vector<64x128xf32>
    %53 = arith.mulf %52, %51 : vector<64x128xf32>
    %54 = arith.maximumf %51, %53 : vector<64x128xf32>
    %c0_16 = arith.constant 0 : index
    %c0_17 = arith.constant 0 : index
    %55 = vector.load %arg6[%c0_16, %c0_17] : memref<64x128xf32, #tpu.memory_space<vmem>>, vector<64x128xf32>
    tpu.vector_store %arg6[%c0_16, %c0_17], %54 {strides = array<i32>} : memref<64x128xf32, #tpu.memory_space<vmem>>, vector<64x128xf32>,
    return
  }
  func.func @transform_0(%arg0: i32) -> (i32, i32) {
    %c0_i32 = arith.constant 0 : i32
    %c0_i32_0 = arith.constant 0 : i32
    return %c0_i32, %arg0 : i32, i32
  }
  func.func @transform_1(%arg0: i32) -> (i32, i32) {
    %c0_i32 = arith.constant 0 : i32
    %c0_i32_0 = arith.constant 0 : i32
    %c0_i32_1 = arith.constant 0 : i32
    return %c0_i32, %c0_i32_0 : i32, i32
  }
  func.func @transform_2(%arg0: i32) -> (i32, i32) {
    %c0_i32 = arith.constant 0 : i32
    %c0_i32_0 = arith.constant 0 : i32
    %c0_i32_1 = arith.constant 0 : i32
    return %c0_i32, %c0_i32_0 : i32, i32
  }
  func.func @transform_3(%arg0: i32) -> (i32, i32) {
    %c0_i32 = arith.constant 0 : i32
    %c0_i32_0 = arith.constant 0 : i32
    %c0_i32_1 = arith.constant 0 : i32
    return %c0_i32, %c0_i32_0 : i32, i32
  }
  func.func @transform_4(%arg0: i32) -> (i32, i32) {
    %c0_i32 = arith.constant 0 : i32
    %c0_i32_0 = arith.constant 0 : i32
    %c0_i32_1 = arith.constant 0 : i32
    return %c0_i32, %c0_i32_0 : i32, i32
  }
  func.func @transform_5(%arg0: i32) -> (i32, i32) {
    %c0_i32 = arith.constant 0 : i32
    %c0_i32_0 = arith.constant 0 : i32
    return %c0_i32, %arg0 : i32, i32
  }
}

</mosaic_0001>

<llo_original>
// kernel: tpu_custom_call.1
$region0: #{tpu_custom_call.1}
  #allocation0 [shape = 'u32[]', space=smem, size = 0x4, offset = 0x4, fixed_abs, tag = 'smem constant byte address 0x4 - core index']
  #allocation1 [shape = 'u32[144,128]{1,0:T(1,128)}', space=vmem, size = 0x12000, scoped, tag = 'internal scratch']
  %s0 = inlined_call_operand.hbm [shape: f32[16,128], index: 0, kind: input, shape index: {}]
  %s1 = inlined_call_operand.vmem [shape: f32[64,64], index: 1, kind: input, shape index: {}]
  %s2 = inlined_call_operand.vmem [shape: f32[64,1], index: 2, kind: input, shape index: {}]
  %s3 = inlined_call_operand.vmem [shape: f32[64,64], index: 3, kind: input, shape index: {}]
  %s4 = inlined_call_operand.vmem [shape: f32[64,1], index: 4, kind: input, shape index: {}]
  %s5 = inlined_call_operand.hbm [shape: f32[64,128], index: 5, kind: output, shape index: {}]
  %s6 = sld [smem:[#allocation0]]
  $region34: #{tpu_custom_call.1} parent=0
    _
  %s8 = ssub.s32 1, %s6
  %s9 = scalar_select 0, %s8, %s6
  $region1: #{tpu_custom_call.1} parent=0
    #allocation2 [shape = 'u8[8192]{0}', space=vmem, size = 0x2000, scoped, tag = 'input window, operand 0, single buffered']
    #allocation3 [shape = 's32[1]{0}', space=sflag, size = 0x4, scoped, tag = 'scoped memory for tpu_custom_call.1']
    #allocation4 [shape = 's32[1]{0}', space=sflag, size = 0x4, scoped, tag = 'scoped memory for tpu_custom_call.1']
    #allocation5 [shape = 'u8[32768]{0}', space=vmem, size = 0x8000, scoped, tag = 'output window, operand 0, single buffered']
    %10 = vsyncpa [#allocation3], 0
    %11 = vsyncpa [#allocation4], 0
    // Predicated region
    $region2: #{tpu_custom_call.1} parent=1 // pred_check
      _
    $region3: #{tpu_custom_call.1} parent=1 // pred_check_branch
      %13 = sbr.rel (0) target = $region5
    $region4: #{tpu_custom_call.1} parent=1 // pred_region
      %s15 = ssub.s32 256, 256
      %16 = vsyncadd [#allocation3], %s15
      %s17 = sshll.u32 [#allocation2], 4
      %s18 = int_to_ptr.vmem [resolvable:$true] %s17
      %23 = dma.hbm_to_vmem [thread:$0]  %s0, 256, %s18, [#allocation3], 128, 128, 8
    $region5: #{tpu_custom_call.1} parent=1 // pred_fallthru
      _
    // Predicated region
    $region6: #{tpu_custom_call.1} parent=1 // pred_check
      _
    $region7: #{tpu_custom_call.1} parent=1 // pred_check_branch
      %25 = sbr.rel (0) target = $region9
    $region8: #{tpu_custom_call.1} parent=1 // pred_region
      _
    $region9: #{tpu_custom_call.1} parent=1 // pred_fallthru
      _
    // Predicated region
    $region10: #{tpu_custom_call.1} parent=1 // pred_check
      _
    $region11: #{tpu_custom_call.1} parent=1 // pred_check_branch
      %27 = sbr.rel (0) target = $region13
    $region12: #{tpu_custom_call.1} parent=1 // pred_region
      _
    $region13: #{tpu_custom_call.1} parent=1 // pred_fallthru
      _
    // Predicated region
    $region14: #{tpu_custom_call.1} parent=1 // pred_check
      _
    $region15: #{tpu_custom_call.1} parent=1 // pred_check_branch
      %29 = sbr.rel (0) target = $region17
    $region16: #{tpu_custom_call.1} parent=1 // pred_region
      _
    $region17: #{tpu_custom_call.1} parent=1 // pred_fallthru
      _
    // Predicated region
    $region18: #{tpu_custom_call.1} parent=1 // pred_check
      _
    $region19: #{tpu_custom_call.1} parent=1 // pred_check_branch
      %31 = sbr.rel (0) target = $region21
    $region20: #{tpu_custom_call.1} parent=1 // pred_region
      _
    $region21: #{tpu_custom_call.1} parent=1 // pred_fallthru
      _
    // Predicated region
    $region22: #{tpu_custom_call.1} parent=1 // pred_check
      _
    $region23: #{tpu_custom_call.1} parent=1 // pred_check_branch
      %33 = sbr.rel (0) target = $region25
    $region24: #{tpu_custom_call.1} parent=1 // pred_region
      %34 = dma.done [#allocation3], 256
    $region25: #{tpu_custom_call.1} parent=1 // pred_fallthru
      _
    %v35 = vld [vmem:[#allocation2] sm:$0xff]
    %v36 = vld [vmem:[#allocation2 + $0x8] sm:$0xff]
    %v37 = vsub.f32 %v36, %v35
    %v38 = vadd.f32 %v37, 1.0
    %v39 = vmul.f32 %v38, 0.5
    %v40 = vadd.f32 %v35, %v39
    %v41 = vrcp.pop %v38
    %v42 = vmul.f32 1.0, %v41
    %v43 = vlog2.pop %v38
    %v44 = vmul.f32 %v43, 0.6931472
    %v46 = vrot.slane %v38, 1
    %vm48 = vcmask 1046528
    %v49 = vsel %vm48, %v46, %v46
    %v50 = vmul.f32 %v38, %v49
    %v52 = vrot.slane %v44, 2
    %vm54 = vcmask 1045504
    %v55 = vsel %vm54, %v52, %v52
    %v56 = vsub.f32 %v55, %v44
    %v57 = vrot.slane %v44, 4
    %vm59 = vcmask 1043456
    %v60 = vsel %vm59, %v57, %v57
    %v61 = vsub.f32 %v60, %v44
    %v63 = vrot.slane %v40, 2
    %v65 = vsel %vm54, %v63, %v63
    %v66 = vsub.f32 %v65, %v40
    %v67 = vmul.f32 %v66, %v42
    %v68 = vrot.slane %v40, 4
    %v70 = vsel %vm59, %v68, %v68
    %v71 = vsub.f32 %v70, %v40
    %v72 = vmul.f32 %v71, %v42
    %v73 = vrot.slane %v40, 6
    %vm75 = vcmask 1041408
    %v76 = vsel %vm75, %v73, %v73
    %v77 = vsub.f32 %v76, %v40
    %v78 = vmul.f32 %v77, %v42
    %v79 = vld [vmem:[%s1] sm:$0xff]
    %v80 = vld [vmem:[%s1 + $0x8] sm:$0xff]
    %v81 = vld [vmem:[%s1 + $0x10] sm:$0xff]
    %v82 = vld [vmem:[%s1 + $0x18] sm:$0xff]
    %v83 = vld [vmem:[%s1 + $0x20] sm:$0xff]
    %v84 = vld [vmem:[%s1 + $0x28] sm:$0xff]
    %v85 = vld [vmem:[%s1 + $0x30] sm:$0xff]
    %v86 = vld [vmem:[%s1 + $0x38] sm:$0xff]
    %v87 = vld [vmem:[%s2] sm:$0xff]
    %v88 = vld [vmem:[%s2 + $0x8] sm:$0xff]
    %v89 = vld [vmem:[%s2 + $0x10] sm:$0xff]
    %v90 = vld [vmem:[%s2 + $0x18] sm:$0xff]
    %v91 = vld [vmem:[%s2 + $0x20] sm:$0xff]
    %v92 = vld [vmem:[%s2 + $0x28] sm:$0xff]
    %v93 = vld [vmem:[%s2 + $0x30] sm:$0xff]
    %v94 = vld [vmem:[%s2 + $0x38] sm:$0xff]
    %96 = vset.pattern.permute.xlu0 0
    %97 = vperm.xlu0 %96, %v87
    %v98 = vpop.permute.xlu0 %97
    %101 = vset.pattern.permute.xlu0 0
    %102 = vperm.xlu0 %101, %v88
    %v103 = vpop.permute.xlu0 %102
    %106 = vset.pattern.permute.xlu0 0
    %107 = vperm.xlu0 %106, %v89
    %v108 = vpop.permute.xlu0 %107
    %111 = vset.pattern.permute.xlu0 0
    %112 = vperm.xlu0 %111, %v90
    %v113 = vpop.permute.xlu0 %112
    %116 = vset.pattern.permute.xlu0 0
    %117 = vperm.xlu0 %116, %v91
    %v118 = vpop.permute.xlu0 %117
    %121 = vset.pattern.permute.xlu0 0
    %122 = vperm.xlu0 %121, %v92
    %v123 = vpop.permute.xlu0 %122
    %126 = vset.pattern.permute.xlu0 0
    %127 = vperm.xlu0 %126, %v93
    %v128 = vpop.permute.xlu0 %127
    %131 = vset.pattern.permute.xlu0 0
    %132 = vperm.xlu0 %131, %v94
    %v133 = vpop.permute.xlu0 %132
    %vm135 = vcmask 523264
    %v137 = vsel %vm135, %v79, 0
    %v140 = vsel %vm135, %v80, 0
    %v143 = vsel %vm135, %v81, 0
    %v146 = vsel %vm135, %v82, 0
    %v149 = vsel %vm135, %v83, 0
    %v152 = vsel %vm135, %v84, 0
    %v155 = vsel %vm135, %v85, 0
    %v158 = vsel %vm135, %v86, 0
    %160 = vmatprep.subr.mxu0 0.0
    %161 = vmatpush1.msra.mxu0 %v35
    %162 = vmatprep.subr.mxu0 0.0
    %163 = vmatpush1.msra.mxu0 %v36
    %164 = vmatprep.subr.mxu0 0.0
    %165 = vmatpush1.msra.mxu0 %v50
    %166 = vmatprep.subr.mxu0 0.0
    %167 = vmatpush1.msra.mxu0 %v56
    %168 = vmatprep.subr.mxu0 0.0
    %169 = vmatpush1.msra.mxu0 %v61
    %170 = vmatprep.subr.mxu0 0.0
    %171 = vmatpush1.msra.mxu0 %v67
    %172 = vmatprep.subr.mxu0 0.0
    %173 = vmatpush1.msra.mxu0 %v72
    %174 = vmatprep.subr.mxu0 0.0
    %175 = vmatpush1.msra.mxu0 %v78
    %176 = vmatprep.subr.mxu0 0.0
    %177 = vmatpush1.msra.mxu0 0.0
    %178 = vmatprep.subr.mxu0 0.0
    %179 = vmatpush1.msra.mxu0 0.0
    %180 = vmatprep.subr.mxu0 0.0
    %181 = vmatpush1.msra.mxu0 0.0
    %182 = vmatprep.subr.mxu0 0.0
    %183 = vmatpush1.msra.mxu0 0.0
    %184 = vmatprep.subr.mxu0 0.0
    %185 = vmatpush1.msra.mxu0 0.0
    %186 = vmatprep.subr.mxu0 0.0
    %187 = vmatpush1.msra.mxu0 0.0
    %188 = vmatprep.subr.mxu0 0.0
    %189 = vmatpush1.msra.mxu0 0.0
    %190 = vmatprep.subr.mxu0 0.0
    %191 = vmatpush1.msra.mxu0 0.0
    %192 = vmatprep.subr.mxu0 0.0
    %193 = vmatpush1.msra.mxu0 0.0
    %194 = vmatprep.subr.mxu0 0.0
    %195 = vmatpush1.msra.mxu0 0.0
    %196 = vmatprep.subr.mxu0 0.0
    %197 = vmatpush1.msra.mxu0 0.0
    %198 = vmatprep.subr.mxu0 0.0
    %199 = vmatpush1.msra.mxu0 0.0
    %200 = vmatprep.subr.mxu0 0.0
    %201 = vmatpush1.msra.mxu0 0.0
    %202 = vmatprep.subr.mxu0 0.0
    %203 = vmatpush1.msra.mxu0 0.0
    %204 = vmatprep.subr.mxu0 0.0
    %205 = vmatpush1.msra.mxu0 0.0
    %206 = vmatprep.subr.mxu0 0.0
    %207 = vmatpush1.msra.mxu0 0.0
    %208 = vmatprep.subr.mxu0 0.0
    %209 = vmatpush1.msra.mxu0 0.0
    %210 = vmatprep.subr.mxu0 0.0
    %211 = vmatpush1.msra.mxu0 0.0
    %212 = vmatprep.subr.mxu0 0.0
    %213 = vmatpush1.msra.mxu0 0.0
    %214 = vmatprep.subr.mxu0 0.0
    %215 = vmatpush1.msra.mxu0 0.0
    %216 = vmatprep.subr.mxu0 0.0
    %217 = vmatpush1.msra.mxu0 0.0
    %218 = vmatprep.subr.mxu0 0.0
    %219 = vmatpush1.msra.mxu0 0.0
    %220 = vmatprep.subr.mxu0 0.0
    %221 = vmatpush1.msra.mxu0 0.0
    %222 = vmatprep.subr.mxu0 0.0
    %223 = vmatpush1.msra.mxu0 0.0
    %224 = vmatprep.mubr.f32.mxu0 0.0
    %225 = vmatmul.mubr.f32.gmra.mrb[0].mxu0 %v137
    %v226 = vpop.f32.mrb[0].mxu0
    %v227 = vadd.f32 %v98, %v226
    %v228 = vpop.f32.mrb[0].mxu0
    %229 = vmatprep.mubr.f32.mxu0 0.0
    %230 = vmatmul.mubr.f32.gmra.mrb[0].mxu0 %v140
    %v231 = vpop.f32.mrb[0].mxu0
    %v232 = vadd.f32 %v103, %v231
    %v233 = vpop.f32.mrb[0].mxu0
    %234 = vmatprep.mubr.f32.mxu0 0.0
    %235 = vmatmul.mubr.f32.gmra.mrb[0].mxu0 %v143
    %v236 = vpop.f32.mrb[0].mxu0
    %v237 = vadd.f32 %v108, %v236
    %v238 = vpop.f32.mrb[0].mxu0
    %239 = vmatprep.mubr.f32.mxu0 0.0
    %240 = vmatmul.mubr.f32.gmra.mrb[0].mxu0 %v146
    %v241 = vpop.f32.mrb[0].mxu0
    %v242 = vadd.f32 %v113, %v241
    %v243 = vpop.f32.mrb[0].mxu0
    %244 = vmatprep.mubr.f32.mxu0 0.0
    %245 = vmatmul.mubr.f32.gmra.mrb[0].mxu0 %v149
    %v246 = vpop.f32.mrb[0].mxu0
    %v247 = vadd.f32 %v118, %v246
    %v248 = vpop.f32.mrb[0].mxu0
    %249 = vmatprep.mubr.f32.mxu0 0.0
    %250 = vmatmul.mubr.f32.gmra.mrb[0].mxu0 %v152
    %v251 = vpop.f32.mrb[0].mxu0
    %v252 = vadd.f32 %v123, %v251
    %v253 = vpop.f32.mrb[0].mxu0
    %254 = vmatprep.mubr.f32.mxu0 0.0
    %255 = vmatmul.mubr.f32.gmra.mrb[0].mxu0 %v155
    %v256 = vpop.f32.mrb[0].mxu0
    %v257 = vadd.f32 %v128, %v256
    %v258 = vpop.f32.mrb[0].mxu0
    %259 = vmatprep.mubr.f32.mxu0 0.0
    %260 = vmatmul.mubr.f32.gmra.mrb[0].mxu0 %v158
    %v261 = vpop.f32.mrb[0].mxu0
    %v262 = vadd.f32 %v133, %v261
    %v263 = vpop.f32.mrb[0].mxu0
    %264 = vdwg.mxu0
    %v265 = vmul.f32 %v227, 0.1
    %v266 = vmul.f32 %v232, 0.1
    %v267 = vmul.f32 %v237, 0.1
    %v268 = vmul.f32 %v242, 0.1
    %v269 = vmul.f32 %v247, 0.1
    %v270 = vmul.f32 %v252, 0.1
    %v271 = vmul.f32 %v257, 0.1
    %v272 = vmul.f32 %v262, 0.1
    %v273 = vmax.f32 %v227, %v265
    %v274 = vmax.f32 %v232, %v266
    %v275 = vmax.f32 %v237, %v267
    %v276 = vmax.f32 %v242, %v268
    %v277 = vmax.f32 %v247, %v269
    %v278 = vmax.f32 %v252, %v270
    %v279 = vmax.f32 %v257, %v271
    %v280 = vmax.f32 %v262, %v272
    %v281 = vld [vmem:[%s3] sm:$0xff]
    %v282 = vld [vmem:[%s3 + $0x8] sm:$0xff]
    %v283 = vld [vmem:[%s3 + $0x10] sm:$0xff]
    %v284 = vld [vmem:[%s3 + $0x18] sm:$0xff]
    %v285 = vld [vmem:[%s3 + $0x20] sm:$0xff]
    %v286 = vld [vmem:[%s3 + $0x28] sm:$0xff]
    %v287 = vld [vmem:[%s3 + $0x30] sm:$0xff]
    %v288 = vld [vmem:[%s3 + $0x38] sm:$0xff]
    %v289 = vld [vmem:[%s4] sm:$0xff]
    %v290 = vld [vmem:[%s4 + $0x8] sm:$0xff]
    %v291 = vld [vmem:[%s4 + $0x10] sm:$0xff]
    %v292 = vld [vmem:[%s4 + $0x18] sm:$0xff]
    %v293 = vld [vmem:[%s4 + $0x20] sm:$0xff]
    %v294 = vld [vmem:[%s4 + $0x28] sm:$0xff]
    %v295 = vld [vmem:[%s4 + $0x30] sm:$0xff]
    %v296 = vld [vmem:[%s4 + $0x38] sm:$0xff]
    %298 = vset.pattern.permute.xlu0 0
    %299 = vperm.xlu0 %298, %v289
    %v300 = vpop.permute.xlu0 %299
    %303 = vset.pattern.permute.xlu0 0
    %304 = vperm.xlu0 %303, %v290
    %v305 = vpop.permute.xlu0 %304
    %308 = vset.pattern.permute.xlu0 0
    %309 = vperm.xlu0 %308, %v291
    %v310 = vpop.permute.xlu0 %309
    %313 = vset.pattern.permute.xlu0 0
    %314 = vperm.xlu0 %313, %v292
    %v315 = vpop.permute.xlu0 %314
    %318 = vset.pattern.permute.xlu0 0
    %319 = vperm.xlu0 %318, %v293
    %v320 = vpop.permute.xlu0 %319
    %323 = vset.pattern.permute.xlu0 0
    %324 = vperm.xlu0 %323, %v294
    %v325 = vpop.permute.xlu0 %324
    %328 = vset.pattern.permute.xlu0 0
    %329 = vperm.xlu0 %328, %v295
    %v330 = vpop.permute.xlu0 %329
    %333 = vset.pattern.permute.xlu0 0
    %334 = vperm.xlu0 %333, %v296
    %v335 = vpop.permute.xlu0 %334
    %v338 = vsel %vm135, %v281, 0
    %v341 = vsel %vm135, %v282, 0
    %v344 = vsel %vm135, %v283, 0
    %v347 = vsel %vm135, %v284, 0
    %v350 = vsel %vm135, %v285, 0
    %v353 = vsel %vm135, %v286, 0
    %v356 = vsel %vm135, %v287, 0
    %v359 = vsel %vm135, %v288, 0
    %361 = vmatprep.subr.mxu0 0.0
    %362 = vmatpush1.msra.mxu0 %v273
    %363 = vmatprep.subr.mxu0 0.0
    %364 = vmatpush1.msra.mxu0 %v274
    %365 = vmatprep.subr.mxu0 0.0
    %366 = vmatpush1.msra.mxu0 %v275
    %367 = vmatprep.subr.mxu0 0.0
    %368 = vmatpush1.msra.mxu0 %v276
    %369 = vmatprep.subr.mxu0 0.0
    %370 = vmatpush1.msra.mxu0 %v277
    %371 = vmatprep.subr.mxu0 0.0
    %372 = vmatpush1.msra.mxu0 %v278
    %373 = vmatprep.subr.mxu0 0.0
    %374 = vmatpush1.msra.mxu0 %v279
    %375 = vmatprep.subr.mxu0 0.0
    %376 = vmatpush1.msra.mxu0 %v280
    %377 = vmatprep.subr.mxu0 0.0
    %378 = vmatpush1.msra.mxu0 0.0
    %379 = vmatprep.subr.mxu0 0.0
    %380 = vmatpush1.msra.mxu0 0.0
    %381 = vmatprep.subr.mxu0 0.0
    %382 = vmatpush1.msra.mxu0 0.0
    %383 = vmatprep.subr.mxu0 0.0
    %384 = vmatpush1.msra.mxu0 0.0
    %385 = vmatprep.subr.mxu0 0.0
    %386 = vmatpush1.msra.mxu0 0.0
    %387 = vmatprep.subr.mxu0 0.0
    %388 = vmatpush1.msra.mxu0 0.0
    %389 = vmatprep.subr.mxu0 0.0
    %390 = vmatpush1.msra.mxu0 0.0
    %391 = vmatprep.subr.mxu0 0.0
    %392 = vmatpush1.msra.mxu0 0.0
    %393 = vmatprep.subr.mxu0 0.0
    %394 = vmatpush1.msra.mxu0 0.0
    %395 = vmatprep.subr.mxu0 0.0
    %396 = vmatpush1.msra.mxu0 0.0
    %397 = vmatprep.subr.mxu0 0.0
    %398 = vmatpush1.msra.mxu0 0.0
    %399 = vmatprep.subr.mxu0 0.0
    %400 = vmatpush1.msra.mxu0 0.0
    %401 = vmatprep.subr.mxu0 0.0
    %402 = vmatpush1.msra.mxu0 0.0
    %403 = vmatprep.subr.mxu0 0.0
    %404 = vmatpush1.msra.mxu0 0.0
    %405 = vmatprep.subr.mxu0 0.0
    %406 = vmatpush1.msra.mxu0 0.0
    %407 = vmatprep.subr.mxu0 0.0
    %408 = vmatpush1.msra.mxu0 0.0
    %409 = vmatprep.subr.mxu0 0.0
    %410 = vmatpush1.msra.mxu0 0.0
    %411 = vmatprep.subr.mxu0 0.0
    %412 = vmatpush1.msra.mxu0 0.0
    %413 = vmatprep.subr.mxu0 0.0
    %414 = vmatpush1.msra.mxu0 0.0
    %415 = vmatprep.subr.mxu0 0.0
    %416 = vmatpush1.msra.mxu0 0.0
    %417 = vmatprep.subr.mxu0 0.0
    %418 = vmatpush1.msra.mxu0 0.0
    %419 = vmatprep.subr.mxu0 0.0
    %420 = vmatpush1.msra.mxu0 0.0
    %421 = vmatprep.subr.mxu0 0.0
    %422 = vmatpush1.msra.mxu0 0.0
    %423 = vmatprep.subr.mxu0 0.0
    %424 = vmatpush1.msra.mxu0 0.0
    %425 = vmatprep.mubr.f32.mxu0 0.0
    %426 = vmatmul.mubr.f32.gmra.mrb[0].mxu0 %v338
    %v427 = vpop.f32.mrb[0].mxu0
    %v428 = vadd.f32 %v300, %v427
    %v429 = vpop.f32.mrb[0].mxu0
    %430 = vmatprep.mubr.f32.mxu0 0.0
    %431 = vmatmul.mubr.f32.gmra.mrb[0].mxu0 %v341
    %v432 = vpop.f32.mrb[0].mxu0
    %v433 = vadd.f32 %v305, %v432
    %v434 = vpop.f32.mrb[0].mxu0
    %435 = vmatprep.mubr.f32.mxu0 0.0
    %436 = vmatmul.mubr.f32.gmra.mrb[0].mxu0 %v344
    %v437 = vpop.f32.mrb[0].mxu0
    %v438 = vadd.f32 %v310, %v437
    %v439 = vpop.f32.mrb[0].mxu0
    %440 = vmatprep.mubr.f32.mxu0 0.0
    %441 = vmatmul.mubr.f32.gmra.mrb[0].mxu0 %v347
    %v442 = vpop.f32.mrb[0].mxu0
    %v443 = vadd.f32 %v315, %v442
    %v444 = vpop.f32.mrb[0].mxu0
    %445 = vmatprep.mubr.f32.mxu0 0.0
    %446 = vmatmul.mubr.f32.gmra.mrb[0].mxu0 %v350
    %v447 = vpop.f32.mrb[0].mxu0
    %v448 = vadd.f32 %v320, %v447
    %v449 = vpop.f32.mrb[0].mxu0
    %450 = vmatprep.mubr.f32.mxu0 0.0
    %451 = vmatmul.mubr.f32.gmra.mrb[0].mxu0 %v353
    %v452 = vpop.f32.mrb[0].mxu0
    %v453 = vadd.f32 %v325, %v452
    %v454 = vpop.f32.mrb[0].mxu0
    %455 = vmatprep.mubr.f32.mxu0 0.0
    %456 = vmatmul.mubr.f32.gmra.mrb[0].mxu0 %v356
    %v457 = vpop.f32.mrb[0].mxu0
    %v458 = vadd.f32 %v330, %v457
    %v459 = vpop.f32.mrb[0].mxu0
    %460 = vmatprep.mubr.f32.mxu0 0.0
    %461 = vmatmul.mubr.f32.gmra.mrb[0].mxu0 %v359
    %v462 = vpop.f32.mrb[0].mxu0
    %v463 = vadd.f32 %v335, %v462
    %v464 = vpop.f32.mrb[0].mxu0
    %465 = vdwg.mxu0
    %v466 = vmul.f32 %v428, 0.1
    %v467 = vmul.f32 %v433, 0.1
    %v468 = vmul.f32 %v438, 0.1
    %v469 = vmul.f32 %v443, 0.1
    %v470 = vmul.f32 %v448, 0.1
    %v471 = vmul.f32 %v453, 0.1
    %v472 = vmul.f32 %v458, 0.1
    %v473 = vmul.f32 %v463, 0.1
    %v474 = vmax.f32 %v428, %v466
    %v475 = vmax.f32 %v433, %v467
    %v476 = vmax.f32 %v438, %v468
    %v477 = vmax.f32 %v443, %v469
    %v478 = vmax.f32 %v448, %v470
    %v479 = vmax.f32 %v453, %v471
    %v480 = vmax.f32 %v458, %v472
    %v481 = vmax.f32 %v463, %v473
    %482 = vst [vmem:[#allocation5] sm:$0xff] %v474
    %483 = vst [vmem:[#allocation5 + $0x8] sm:$0xff] %v475
    %484 = vst [vmem:[#allocation5 + $0x10] sm:$0xff] %v476
    %485 = vst [vmem:[#allocation5 + $0x18] sm:$0xff] %v477
    %486 = vst [vmem:[#allocation5 + $0x20] sm:$0xff] %v478
    %487 = vst [vmem:[#allocation5 + $0x28] sm:$0xff] %v479
    %488 = vst [vmem:[#allocation5 + $0x30] sm:$0xff] %v480
    %489 = vst [vmem:[#allocation5 + $0x38] sm:$0xff] %v481
    // Predicated region
    $region26: #{tpu_custom_call.1} parent=1 // pred_check
      _
    $region27: #{tpu_custom_call.1} parent=1 // pred_check_branch
      %491 = sbr.rel (0) target = $region29
    $region28: #{tpu_custom_call.1} parent=1 // pred_region
      %s493 = ssub.s32 1024, 1024
      %494 = vsyncadd [#allocation4], %s493
      %s495 = sshll.u32 [#allocation5], 4
      %s496 = int_to_ptr.vmem [resolvable:$true] %s495
      %501 = dma.vmem_to_hbm [thread:$0]  %s496, 1024, %s5, [#allocation4], 128, 128, 8
    $region29: #{tpu_custom_call.1} parent=1 // pred_fallthru
      _
    // Predicated region
    $region30: #{tpu_custom_call.1} parent=1 // pred_check
      _
    $region31: #{tpu_custom_call.1} parent=1 // pred_check_branch
      %503 = sbr.rel (0) target = $region33
    $region32: #{tpu_custom_call.1} parent=1 // pred_region
      %504 = dma.done [#allocation4], 1024
    $region33: #{tpu_custom_call.1} parent=1 // pred_fallthru
      _
    %505 = vsyncpa [#allocation3], 1
    %506 = vsyncpa [#allocation4], 1

</llo_original>
